<compile_context>
chip_gen: v7x
topology: tpu7x:2x2x1
jax: 0.10.0
libtpu: 0.0.40
codegen_flags: <defaults>
</compile_context>

<pallas_src>
import jax
import jax.numpy as jnp
from jax.experimental import pallas as pl
from jax.experimental.pallas import tpu as pltpu

# Logical sizes from the module.
IN_F = 43
HID = 96
OUT_F = 1

LANE = 128          # batch lives on the lane axis -> lane-aligned tiles
MAX_TILE_B = 2048   # batch-tile cap (lanes); a few MiB of VMEM at most


def _mlp_kernel(x_ref, w1_ref, b1_ref, w2_ref, b2_ref, w3_ref, b3_ref, o_ref):
    """Feature-major 3-layer tanh MLP on one batch tile (batch on lanes).

    x_ref  : (43, TILE_B) bf16       one batch tile, batch on the lane axis
    w1_ref : (96, 43) bf16           b1_ref : (96, 1) f32
    w2_ref : (96, 96) bf16           b2_ref : (96, 1) f32
    w3_ref : (1, 96)  bf16           b3_ref : (1, 1)  f32
    o_ref  : (1, TILE_B) f32         lane-dense output row
    """
    h1 = jnp.tanh(
        jnp.dot(w1_ref[...], x_ref[...], preferred_element_type=jnp.float32)
        + b1_ref[...]
    )
    h2 = jnp.tanh(
        jnp.dot(w2_ref[...], h1.astype(jnp.bfloat16),
                preferred_element_type=jnp.float32)
        + b2_ref[...]
    )
    h3 = (
        jnp.dot(w3_ref[...], h2.astype(jnp.bfloat16),
                preferred_element_type=jnp.float32)
        + b3_ref[...]
    )
    o_ref[...] = jnp.tanh(h3)


def prepare_params(params):
    """One-time packing of (w1,b1,w2,b2,w3,b3) for the feature-major kernel.

    Call once (e.g. at init), NOT per forward step.  Incoming weights are
    stored (in_features, out_features); they are transposed to (out, in) and
    cast to bf16 here, biases become f32 column vectors.
    """
    w1, b1, w2, b2, w3, b3 = params
    return (
        w1.T.astype(jnp.bfloat16),                 # (96, 43)
        b1.reshape(HID, 1).astype(jnp.float32),    # (96, 1)
        w2.T.astype(jnp.bfloat16),                 # (96, 96)
        b2.reshape(HID, 1).astype(jnp.float32),    # (96, 1)
        w3.reshape(HID, OUT_F).T.astype(jnp.bfloat16),  # (1, 96)
        b3.reshape(OUT_F, 1).astype(jnp.float32),  # (1, 1)
    )


@jax.jit
def ai_evaluation_forward(x, prepared):
    """x: (B, 43) float32 board-state vectors.  Returns (B, 1) float32."""
    w1t, b1, w2t, b2, w3r, b3 = prepared
    B = x.shape[0]

    # Lane-aligned batch tile, capped, and split so large batches get >= 2
    # grid steps (v7x has 2 TensorCores; v5e/v6e are unaffected).
    tile_b = min(MAX_TILE_B, pl.cdiv(pl.cdiv(B, 2), LANE) * LANE)
    num_tiles = pl.cdiv(B, tile_b)

    # Single fused transpose + bf16 cast (exact for {-1,0,1} board inputs);
    # no padding -- the ragged last tile is handled by Pallas partial blocks.
    x_t = x.T.astype(jnp.bfloat16)                 # (43, B)

    per_row_flops = 2 * (IN_F * HID + HID * HID + HID * OUT_F)
    cost = pl.CostEstimate(
        flops=B * per_row_flops,
        transcendentals=B * (HID + HID + OUT_F),
        bytes_accessed=(B * IN_F * 2 + B * OUT_F * 4
                        + (IN_F * HID + HID * HID + HID * OUT_F) * 2
                        + (HID + HID + OUT_F) * 4),
    )

    const = lambda shape: pl.BlockSpec(shape, lambda i: (0, 0))

    out = pl.pallas_call(
        _mlp_kernel,
        out_shape=jax.ShapeDtypeStruct((OUT_F, B), jnp.float32),
        grid=(num_tiles,),
        in_specs=[
            pl.BlockSpec((IN_F, tile_b), lambda i: (0, i)),  # x: streamed tiles
            const((HID, IN_F)),                              # w1^T: resident
            const((HID, 1)),                                 # b1
            const((HID, HID)),                               # w2^T
            const((HID, 1)),                                 # b2
            const((OUT_F, HID)),                             # w3 (1, 96)
            const((OUT_F, 1)),                               # b3
        ],
        out_specs=pl.BlockSpec((OUT_F, tile_b), lambda i: (0, i)),
        compiler_params=pltpu.CompilerParams(
            dimension_semantics=("parallel",),
        ),
        cost_estimate=cost,
    )(x_t, w1t, b1, w2t, b2, w3r, b3)

    return out.T                                   # (B, 1)


def init_params(key):
    """Deterministic init mimicking torch.nn.Linear (U[-1/sqrt(fan_in), +])."""
    ks = jax.random.split(key, 6)

    def linear(kw, kb, fan_in, fan_out):
        bound = 1.0 / jnp.sqrt(jnp.float32(fan_in))
        w = jax.random.uniform(kw, (fan_in, fan_out), jnp.float32, -bound, bound)
        b = jax.random.uniform(kb, (fan_out,), jnp.float32, -bound, bound)
        return w, b

    w1, b1 = linear(ks[0], ks[1], IN_F, HID)
    w2, b2 = linear(ks[2], ks[3], HID, HID)
    w3, b3 = linear(ks[4], ks[5], HID, OUT_F)
    return (w1, b1, w2, b2, w3, b3)


def _reference(x, prepared):
    """Pure-JAX reference matching the kernel's bf16 storage / f32 accumulate."""
    w1t, b1, w2t, b2, w3r, b3 = prepared
    xb = x.astype(jnp.bfloat16)
    h1 = jnp.tanh(jnp.dot(xb, w1t.T, preferred_element_type=jnp.float32)
                  + b1.reshape(1, HID))
    h2 = jnp.tanh(jnp.dot(h1.astype(jnp.bfloat16), w2t.T,
                          preferred_element_type=jnp.float32)
                  + b2.reshape(1, HID))
    h3 = (jnp.dot(h2.astype(jnp.bfloat16), w3r.T,
                  preferred_element_type=jnp.float32)
          + b3.reshape(1, OUT_F))
    return jnp.tanh(h3)


# TODO(synk): gameStateToTensor/fillBoard are host-side Python list
# preprocessing (not tensor ops); callers are expected to pass the (B, 43)
# float board-state vectors directly, as the PyTorch module does for tensors.

if __name__ == "__main__":
    key = jax.random.PRNGKey(0)
    kp, kx1, kx2 = jax.random.split(key, 3)
    prepared = prepare_params(init_params(kp))

    # Batch of 8 "board state" vectors of length 43 (42 grid cells + turn),
    # values in {-1, 0, 1} like gameStateToTensor would produce.
    B = 8
    x = jax.random.randint(kx1, (B, IN_F), -1, 2).astype(jnp.float32)
    out = jax.block_until_ready(ai_evaluation_forward(x, prepared))
    ref = _reference(x, prepared)
    assert out.shape == (B, OUT_F), out.shape
    assert jnp.allclose(out, ref, atol=1e-3, rtol=1e-3), (out, ref)

    # Larger, non-tile-aligned batch: exercises the multi-step batch grid
    # (resident weights, streamed lane tiles) and the ragged last block.
    B2 = 1000
    x2 = jax.random.randint(kx2, (B2, IN_F), -1, 2).astype(jnp.float32)
    out2 = jax.block_until_ready(ai_evaluation_forward(x2, prepared))
    ref2 = _reference(x2, prepared)
    assert out2.shape == (B2, OUT_F), out2.shape
    assert jnp.allclose(out2, ref2, atol=1e-3, rtol=1e-3)

    print("KERNEL_OK")
</pallas_src>

<mosaic_0001>
module attributes {stable_mosaic.version = 11 : i64} {
  func.func @_mlp_kernel(%arg0: i32, %arg1: memref<43x128xbf16, #tpu.memory_space<vmem>>, %arg2: memref<96x43xbf16, #tpu.memory_space<vmem>>, %arg3: memref<96x1xf32, #tpu.memory_space<vmem>>, %arg4: memref<96x96xbf16, #tpu.memory_space<vmem>>, %arg5: memref<96x1xf32, #tpu.memory_space<vmem>>, %arg6: memref<1x96xbf16, #tpu.memory_space<vmem>>, %arg7: memref<1x1xf32, #tpu.memory_space<vmem>>, %arg8: memref<1x128xf32, #tpu.memory_space<vmem>>) attributes {dimension_semantics = [#tpu.dimension_semantics<parallel>], iteration_bounds = array<i64: 1>, scalar_prefetch = 0 : i64, scratch_operands = 0 : i64, tpu.core_type = #tpu.core_type<tc>, window_params = [{transform_indices = @transform_0, window_bounds = array<i64: 43, 128>}, {pipeline_mode = #tpu.pipeline_mode<synchronous>, transform_indices = @transform_1, window_bounds = array<i64: 96, 43>}, {pipeline_mode = #tpu.pipeline_mode<synchronous>, transform_indices = @transform_2, window_bounds = array<i64: 96, 1>}, {pipeline_mode = #tpu.pipeline_mode<synchronous>, transform_indices = @transform_3, window_bounds = array<i64: 96, 96>}, {pipeline_mode = #tpu.pipeline_mode<synchronous>, transform_indices = @transform_4, window_bounds = array<i64: 96, 1>}, {pipeline_mode = #tpu.pipeline_mode<synchronous>, transform_indices = @transform_5, window_bounds = array<i64: 1, 96>}, {pipeline_mode = #tpu.pipeline_mode<synchronous>, transform_indices = @transform_6, window_bounds = array<i64: 1, 1>}, {transform_indices = @transform_7, window_bounds = array<i64: 1, 128>}]} {
    %c0 = arith.constant 0 : index
    %c0_0 = arith.constant 0 : index
    %0 = vector.load %arg2[%c0, %c0_0] : memref<96x43xbf16, #tpu.memory_space<vmem>>, vector<96x43xbf16>
    %c0_1 = arith.constant 0 : index
    %c0_2 = arith.constant 0 : index
    %1 = vector.load %arg1[%c0_1, %c0_2] : memref<43x128xbf16, #tpu.memory_space<vmem>>, vector<43x128xbf16>
    %cst = arith.constant dense<0.000000e+00> : vector<96x128xf32>
    %2 = tpu.matmul %0, %1, %cst {dimension_numbers = #tpu.dot_dimension_numbers<[1], [0], [0], [1], [0, 0, 1, 1], [], []>} : vector<96x43xbf16>, vector<43x128xbf16>, vector<96x128xf32> -> vector<96x128xf32>
    %c0_3 = arith.constant 0 : index
    %c0_4 = arith.constant 0 : index
    %3 = vector.load %arg3[%c0_3, %c0_4] : memref<96x1xf32, #tpu.memory_space<vmem>>, vector<96x1xf32>
    %4 = vector.broadcast %3 : vector<96x1xf32> to vector<96x128xf32>
    %5 = arith.addf %2, %4 : vector<96x128xf32>
    %6 = math.tanh %5 : vector<96x128xf32>
    %c0_5 = arith.constant 0 : index
    %c0_6 = arith.constant 0 : index
    %7 = vector.load %arg4[%c0_5, %c0_6] : memref<96x96xbf16, #tpu.memory_space<vmem>>, vector<96x96xbf16>
    %8 = arith.truncf %6 : vector<96x128xf32> to vector<96x128xbf16>
    %cst_7 = arith.constant dense<0.000000e+00> : vector<96x128xf32>
    %9 = tpu.matmul %7, %8, %cst_7 {dimension_numbers = #tpu.dot_dimension_numbers<[1], [0], [0], [1], [0, 0, 1, 1], [], []>} : vector<96x96xbf16>, vector<96x128xbf16>, vector<96x128xf32> -> vector<96x128xf32>
    %c0_8 = arith.constant 0 : index
    %c0_9 = arith.constant 0 : index
    %10 = vector.load %arg5[%c0_8, %c0_9] : memref<96x1xf32, #tpu.memory_space<vmem>>, vector<96x1xf32>
    %11 = vector.broadcast %10 : vector<96x1xf32> to vector<96x128xf32>
    %12 = arith.addf %9, %11 : vector<96x128xf32>
    %13 = math.tanh %12 : vector<96x128xf32>
    %c0_10 = arith.constant 0 : index
    %c0_11 = arith.constant 0 : index
    %14 = vector.load %arg6[%c0_10, %c0_11] : memref<1x96xbf16, #tpu.memory_space<vmem>>, vector<1x96xbf16>
    %15 = arith.truncf %13 : vector<96x128xf32> to vector<96x128xbf16>
    %cst_12 = arith.constant dense<0.000000e+00> : vector<1x128xf32>
    %16 = tpu.matmul %14, %15, %cst_12 {dimension_numbers = #tpu.dot_dimension_numbers<[1], [0], [0], [1], [0, 0, 1, 1], [], []>} : vector<1x96xbf16>, vector<96x128xbf16>, vector<1x128xf32> -> vector<1x128xf32>
    %c0_13 = arith.constant 0 : index
    %c0_14 = arith.constant 0 : index
    %17 = vector.load %arg7[%c0_13, %c0_14] : memref<1x1xf32, #tpu.memory_space<vmem>>, vector<1x1xf32>
    %18 = vector.broadcast %17 : vector<1x1xf32> to vector<1x128xf32>
    %19 = arith.addf %16, %18 : vector<1x128xf32>
    %20 = math.tanh %19 : vector<1x128xf32>
    %c0_15 = arith.constant 0 : index
    %c0_16 = arith.constant 0 : index
    %21 = vector.load %arg8[%c0_15, %c0_16] : memref<1x128xf32, #tpu.memory_space<vmem>>, vector<1x128xf32>
    tpu.vector_store %arg8[%c0_15, %c0_16], %20 {strides = array<i32>} : memref<1x128xf32, #tpu.memory_space<vmem>>, vector<1x128xf32>,
    return
  }
  func.func @transform_0(%arg0: i32) -> (i32, i32) {
    %c0_i32 = arith.constant 0 : i32
    %c0_i32_0 = arith.constant 0 : i32
    return %c0_i32, %arg0 : i32, i32
  }
  func.func @transform_1(%arg0: i32) -> (i32, i32) {
    %c0_i32 = arith.constant 0 : i32
    %c0_i32_0 = arith.constant 0 : i32
    %c0_i32_1 = arith.constant 0 : i32
    return %c0_i32, %c0_i32_0 : i32, i32
  }
  func.func @transform_2(%arg0: i32) -> (i32, i32) {
    %c0_i32 = arith.constant 0 : i32
    %c0_i32_0 = arith.constant 0 : i32
    %c0_i32_1 = arith.constant 0 : i32
    return %c0_i32, %c0_i32_0 : i32, i32
  }
  func.func @transform_3(%arg0: i32) -> (i32, i32) {
    %c0_i32 = arith.constant 0 : i32
    %c0_i32_0 = arith.constant 0 : i32
    %c0_i32_1 = arith.constant 0 : i32
    return %c0_i32, %c0_i32_0 : i32, i32
  }
  func.func @transform_4(%arg0: i32) -> (i32, i32) {
    %c0_i32 = arith.constant 0 : i32
    %c0_i32_0 = arith.constant 0 : i32
    %c0_i32_1 = arith.constant 0 : i32
    return %c0_i32, %c0_i32_0 : i32, i32
  }
  func.func @transform_5(%arg0: i32) -> (i32, i32) {
    %c0_i32 = arith.constant 0 : i32
    %c0_i32_0 = arith.constant 0 : i32
    %c0_i32_1 = arith.constant 0 : i32
    return %c0_i32, %c0_i32_0 : i32, i32
  }
  func.func @transform_6(%arg0: i32) -> (i32, i32) {
    %c0_i32 = arith.constant 0 : i32
    %c0_i32_0 = arith.constant 0 : i32
    %c0_i32_1 = arith.constant 0 : i32
    return %c0_i32, %c0_i32_0 : i32, i32
  }
  func.func @transform_7(%arg0: i32) -> (i32, i32) {
    %c0_i32 = arith.constant 0 : i32
    %c0_i32_0 = arith.constant 0 : i32
    return %c0_i32, %arg0 : i32, i32
  }
}

</mosaic_0001>

<llo_original>
// kernel: ai_evaluation_forward.1
$region0: #{ai_evaluation_forward.1}
  #allocation0 [shape = 'u32[]', space=smem, size = 0x4, offset = 0x4, fixed_abs, tag = 'smem constant byte address 0x4 - core index']
  #allocation1 [shape = 'u32[144,128]{1,0:T(1,128)}', space=vmem, size = 0x12000, scoped, tag = 'internal scratch']
  #allocation2 [shape = 'f32[1,1]{1,0:T(1,128)S(1)}', space=vmem, size = 0x200, scoped, tag = 'scoped memory for ai_evaluation_forward.1']
  %s0 = inlined_call_operand.vmem [shape: bf16[43,8], index: 0, kind: input, shape index: {}]
  %s1 = inlined_call_operand.vmem [shape: bf16[96,43], index: 1, kind: input, shape index: {}]
  %s2 = inlined_call_operand.vmem [shape: f32[96,1], index: 2, kind: input, shape index: {}]
  %s3 = inlined_call_operand.vmem [shape: bf16[96,96], index: 3, kind: input, shape index: {}]
  %s4 = inlined_call_operand.vmem [shape: f32[96,1], index: 4, kind: input, shape index: {}]
  %s5 = inlined_call_operand.vmem [shape: bf16[1,96], index: 5, kind: input, shape index: {}]
  %s6 = inlined_call_operand.<no memory space> [shape: f32[1,1], index: 6, kind: input, shape index: {}]
  %s7 = inlined_call_operand.hbm [shape: f32[1,8], index: 7, kind: output, shape index: {}]
  %s8 = sld [smem:[#allocation0]]
  $region38: #{ai_evaluation_forward.1} parent=0
    _
  %s10 = ssub.s32 1, %s8
  %s11 = scalar_select 0, %s10, %s8
  %v12 = vstv %s6
  %13 = vst [vmem:[#allocation2] sm:$0x1] %v12
  $region1: #{ai_evaluation_forward.1} parent=0
    #allocation3 [shape = 'u8[512]{0}', space=vmem, size = 0x400, scoped, tag = 'output window, operand 0, single buffered']
    #allocation4 [shape = 's32[1]{0}', space=sflag, size = 0x4, scoped, tag = 'scoped memory for ai_evaluation_forward.1']
    %14 = vsyncpa [#allocation4], 0
    // Predicated region
    $region2: #{ai_evaluation_forward.1} parent=1 // pred_check
      _
    $region3: #{ai_evaluation_forward.1} parent=1 // pred_check_branch
      %16 = sbr.rel (0) target = $region5
    $region4: #{ai_evaluation_forward.1} parent=1 // pred_region
      _
    $region5: #{ai_evaluation_forward.1} parent=1 // pred_fallthru
      _
    // Predicated region
    $region6: #{ai_evaluation_forward.1} parent=1 // pred_check
      _
    $region7: #{ai_evaluation_forward.1} parent=1 // pred_check_branch
      %18 = sbr.rel (0) target = $region9
    $region8: #{ai_evaluation_forward.1} parent=1 // pred_region
      _
    $region9: #{ai_evaluation_forward.1} parent=1 // pred_fallthru
      _
    // Predicated region
    $region10: #{ai_evaluation_forward.1} parent=1 // pred_check
      _
    $region11: #{ai_evaluation_forward.1} parent=1 // pred_check_branch
      %20 = sbr.rel (0) target = $region13
    $region12: #{ai_evaluation_forward.1} parent=1 // pred_region
      _
    $region13: #{ai_evaluation_forward.1} parent=1 // pred_fallthru
      _
    // Predicated region
    $region14: #{ai_evaluation_forward.1} parent=1 // pred_check
      _
    $region15: #{ai_evaluation_forward.1} parent=1 // pred_check_branch
      %22 = sbr.rel (0) target = $region17
    $region16: #{ai_evaluation_forward.1} parent=1 // pred_region
      _
    $region17: #{ai_evaluation_forward.1} parent=1 // pred_fallthru
      _
    // Predicated region
    $region18: #{ai_evaluation_forward.1} parent=1 // pred_check
      _
    $region19: #{ai_evaluation_forward.1} parent=1 // pred_check_branch
      %24 = sbr.rel (0) target = $region21
    $region20: #{ai_evaluation_forward.1} parent=1 // pred_region
      _
    $region21: #{ai_evaluation_forward.1} parent=1 // pred_fallthru
      _
    // Predicated region
    $region22: #{ai_evaluation_forward.1} parent=1 // pred_check
      _
    $region23: #{ai_evaluation_forward.1} parent=1 // pred_check_branch
      %26 = sbr.rel (0) target = $region25
    $region24: #{ai_evaluation_forward.1} parent=1 // pred_region
      _
    $region25: #{ai_evaluation_forward.1} parent=1 // pred_fallthru
      _
    // Predicated region
    $region26: #{ai_evaluation_forward.1} parent=1 // pred_check
      _
    $region27: #{ai_evaluation_forward.1} parent=1 // pred_check_branch
      %28 = sbr.rel (0) target = $region29
    $region28: #{ai_evaluation_forward.1} parent=1 // pred_region
      _
    $region29: #{ai_evaluation_forward.1} parent=1 // pred_fallthru
      _
    %v30 = vld [vmem:[%s1] sm:$0xf]
    %v31 = vld [vmem:[%s1 + $0x4] sm:$0xf]
    %v32 = vld [vmem:[%s1 + $0x8] sm:$0xf]
    %v33 = vld [vmem:[%s1 + $0xc] sm:$0xf]
    %v34 = vld [vmem:[%s1 + $0x10] sm:$0xf]
    %v35 = vld [vmem:[%s1 + $0x14] sm:$0xf]
    %v36 = vld [vmem:[%s1 + $0x18] sm:$0xf]
    %v37 = vld [vmem:[%s1 + $0x1c] sm:$0xf]
    %v38 = vld [vmem:[%s1 + $0x20] sm:$0xf]
    %v39 = vld [vmem:[%s1 + $0x24] sm:$0xf]
    %v40 = vld [vmem:[%s1 + $0x28] sm:$0xf]
    %v41 = vld [vmem:[%s1 + $0x2c] sm:$0xf]
    %v42 = vld [vmem:[%s0] sm:$0xf]
    %v43 = vld [vmem:[%s0 + $0x4] sm:$0xf]
    %v44 = vld [vmem:[%s0 + $0x8] sm:$0xf]
    %v45 = vld [vmem:[%s0 + $0xc] sm:$0xf]
    %v46 = vld [vmem:[%s0 + $0x10] sm:$0xf]
    %v47 = vld [vmem:[%s0 + $0x14] sm:$0x3]
    %v48 = vld [vmem:[%s2] sm:$0xff]
    %v49 = vld [vmem:[%s2 + $0x8] sm:$0xff]
    %v50 = vld [vmem:[%s2 + $0x10] sm:$0xff]
    %v51 = vld [vmem:[%s2 + $0x18] sm:$0xff]
    %v52 = vld [vmem:[%s2 + $0x20] sm:$0xff]
    %v53 = vld [vmem:[%s2 + $0x28] sm:$0xff]
    %v54 = vld [vmem:[%s2 + $0x30] sm:$0xff]
    %v55 = vld [vmem:[%s2 + $0x38] sm:$0xff]
    %v56 = vld [vmem:[%s2 + $0x40] sm:$0xff]
    %v57 = vld [vmem:[%s2 + $0x48] sm:$0xff]
    %v58 = vld [vmem:[%s2 + $0x50] sm:$0xff]
    %v59 = vld [vmem:[%s2 + $0x58] sm:$0xff]
    %61 = vset.pattern.permute.xlu0 0
    %62 = vperm.xlu0 %61, %v48
    %v63 = vpop.permute.xlu0 %62
    %66 = vset.pattern.permute.xlu0 0
    %67 = vperm.xlu0 %66, %v49
    %v68 = vpop.permute.xlu0 %67
    %71 = vset.pattern.permute.xlu0 0
    %72 = vperm.xlu0 %71, %v50
    %v73 = vpop.permute.xlu0 %72
    %76 = vset.pattern.permute.xlu0 0
    %77 = vperm.xlu0 %76, %v51
    %v78 = vpop.permute.xlu0 %77
    %81 = vset.pattern.permute.xlu0 0
    %82 = vperm.xlu0 %81, %v52
    %v83 = vpop.permute.xlu0 %82
    %86 = vset.pattern.permute.xlu0 0
    %87 = vperm.xlu0 %86, %v53
    %v88 = vpop.permute.xlu0 %87
    %91 = vset.pattern.permute.xlu0 0
    %92 = vperm.xlu0 %91, %v54
    %v93 = vpop.permute.xlu0 %92
    %96 = vset.pattern.permute.xlu0 0
    %97 = vperm.xlu0 %96, %v55
    %v98 = vpop.permute.xlu0 %97
    %101 = vset.pattern.permute.xlu0 0
    %102 = vperm.xlu0 %101, %v56
    %v103 = vpop.permute.xlu0 %102
    %106 = vset.pattern.permute.xlu0 0
    %107 = vperm.xlu0 %106, %v57
    %v108 = vpop.permute.xlu0 %107
    %111 = vset.pattern.permute.xlu0 0
    %112 = vperm.xlu0 %111, %v58
    %v113 = vpop.permute.xlu0 %112
    %116 = vset.pattern.permute.xlu0 0
    %117 = vperm.xlu0 %116, %v59
    %v118 = vpop.permute.xlu0 %117
    %v132 = vunpack.c.l.b16 %v30
    %v133 = vunpack.c.l.b16 %v31
    %v134 = vunpack.c.l.b16 %v32
    %v135 = vunpack.c.l.b16 %v33
    %v136 = vunpack.c.l.b16 %v34
    %v137 = vunpack.c.l.b16 %v35
    %v138 = vunpack.c.l.b16 %v36
    %v139 = vunpack.c.l.b16 %v37
    %v140 = vunpack.c.l.b16 %v38
    %v141 = vunpack.c.l.b16 %v39
    %v142 = vunpack.c.l.b16 %v40
    %v143 = vunpack.c.l.b16 %v41
    %v144 = vpack.c.b16 %v133, %v132
    %v145 = vpack.c.b16 %v135, %v134
    %v146 = vpack.c.b16 %v137, %v136
    %v147 = vpack.c.b16 %v139, %v138
    %v148 = vpack.c.b16 %v141, %v140
    %v149 = vpack.c.b16 %v143, %v142
    %v156 = vunpack.c.l.b16 %v42
    %v157 = vunpack.c.l.b16 %v43
    %v158 = vunpack.c.l.b16 %v44
    %v159 = vunpack.c.l.b16 %v45
    %v160 = vunpack.c.l.b16 %v46
    %v161 = vunpack.c.l.b16 %v47
    %v162 = vpack.c.b16 %v157, %v156
    %v163 = vpack.c.b16 %v159, %v158
    %v164 = vpack.c.b16 %v161, %v160
    %vm167 = vcmask 351232
    %v169 = vsel %vm167, %v144, 0
    %v172 = vsel %vm167, %v145, 0
    %v175 = vsel %vm167, %v146, 0
    %v178 = vsel %vm167, %v147, 0
    %v181 = vsel %vm167, %v148, 0
    %v184 = vsel %vm167, %v149, 0
    %vm186 = vcmask 1044480
    %vm187 = vcmask 1045504
    %v188 = vsel %vm186, 4294967295, 65535
    %v189 = vsel %vm187, %v188, 0
    %v191 = vand.u32 %v164, %v189
    %193 = vmatprep.subr.bf16.mxu0 0
    %194 = vmatpush1.bf16.msra.mxu0 %v162
    %195 = vmatprep.subr.bf16.mxu0 0
    %196 = vmatpush1.bf16.msra.mxu0 %v163
    %197 = vmatprep.subr.bf16.mxu0 0
    %198 = vmatpush1.bf16.msra.mxu0 %v191
    %199 = vmatprep.subr.bf16.mxu0 0
    %200 = vmatpush1.bf16.msra.mxu0 0
    %201 = vmatprep.subr.bf16.mxu0 0
    %202 = vmatpush1.bf16.msra.mxu0 0
    %203 = vmatprep.subr.bf16.mxu0 0
    %204 = vmatpush1.bf16.msra.mxu0 0
    %205 = vmatprep.subr.bf16.mxu0 0
    %206 = vmatpush1.bf16.msra.mxu0 0
    %207 = vmatprep.subr.bf16.mxu0 0
    %208 = vmatpush1.bf16.msra.mxu0 0
    %209 = vmatprep.subr.bf16.mxu0 0
    %210 = vmatpush1.bf16.msra.mxu0 0
    %211 = vmatprep.subr.bf16.mxu0 0
    %212 = vmatpush1.bf16.msra.mxu0 0
    %213 = vmatprep.subr.bf16.mxu0 0
    %214 = vmatpush1.bf16.msra.mxu0 0
    %215 = vmatprep.subr.bf16.mxu0 0
    %216 = vmatpush1.bf16.msra.mxu0 0
    %217 = vmatprep.subr.bf16.mxu0 0
    %218 = vmatpush1.bf16.msra.mxu0 0
    %219 = vmatprep.subr.bf16.mxu0 0
    %220 = vmatpush1.bf16.msra.mxu0 0
    %221 = vmatprep.subr.bf16.mxu0 0
    %222 = vmatpush1.bf16.msra.mxu0 0
    %223 = vmatprep.subr.bf16.mxu0 0
    %224 = vmatpush1.bf16.msra.mxu0 0
    %225 = vmatprep.mubr.bf16.mxu0 0
    %226 = vmatmul.mubr.bf16.gmra.mrb[0].mxu0 %v169
    %v227 = vpop.f32.mrb[0].mxu0
    %v228 = vadd.f32 %v63, %v227
    %v229 = vpop.f32.mrb[0].mxu0
    %v230 = vpop.f32.mrb[0].mxu0
    %v231 = vadd.f32 %v68, %v230
    %v232 = vpop.f32.mrb[0].mxu0
    %233 = vmatprep.mubr.bf16.mxu0 0
    %234 = vmatmul.mubr.bf16.gmra.mrb[0].mxu0 %v172
    %v235 = vpop.f32.mrb[0].mxu0
    %v236 = vadd.f32 %v73, %v235
    %v237 = vpop.f32.mrb[0].mxu0
    %v238 = vpop.f32.mrb[0].mxu0
    %v239 = vadd.f32 %v78, %v238
    %v240 = vpop.f32.mrb[0].mxu0
    %241 = vmatprep.mubr.bf16.mxu0 0
    %242 = vmatmul.mubr.bf16.gmra.mrb[0].mxu0 %v175
    %v243 = vpop.f32.mrb[0].mxu0
    %v244 = vadd.f32 %v83, %v243
    %v245 = vpop.f32.mrb[0].mxu0
    %v246 = vpop.f32.mrb[0].mxu0
    %v247 = vadd.f32 %v88, %v246
    %v248 = vpop.f32.mrb[0].mxu0
    %249 = vmatprep.mubr.bf16.mxu0 0
    %250 = vmatmul.mubr.bf16.gmra.mrb[0].mxu0 %v178
    %v251 = vpop.f32.mrb[0].mxu0
    %v252 = vadd.f32 %v93, %v251
    %v253 = vpop.f32.mrb[0].mxu0
    %v254 = vpop.f32.mrb[0].mxu0
    %v255 = vadd.f32 %v98, %v254
    %v256 = vpop.f32.mrb[0].mxu0
    %257 = vmatprep.mubr.bf16.mxu0 0
    %258 = vmatmul.mubr.bf16.gmra.mrb[0].mxu0 %v181
    %v259 = vpop.f32.mrb[0].mxu0
    %v260 = vadd.f32 %v103, %v259
    %v261 = vpop.f32.mrb[0].mxu0
    %v262 = vpop.f32.mrb[0].mxu0
    %v263 = vadd.f32 %v108, %v262
    %v264 = vpop.f32.mrb[0].mxu0
    %265 = vmatprep.mubr.bf16.mxu0 0
    %266 = vmatmul.mubr.bf16.gmra.mrb[0].mxu0 %v184
    %v267 = vpop.f32.mrb[0].mxu0
    %v268 = vadd.f32 %v113, %v267
    %v269 = vpop.f32.mrb[0].mxu0
    %v270 = vpop.f32.mrb[0].mxu0
    %v271 = vadd.f32 %v118, %v270
    %v272 = vpop.f32.mrb[0].mxu0
    %273 = vdwg.mxu0
    %v274 = vtanh.pop %v228
    %v275 = vtanh.pop %v231
    %v276 = vtanh.pop %v236
    %v277 = vtanh.pop %v239
    %v278 = vtanh.pop %v244
    %v279 = vtanh.pop %v247
    %v280 = vtanh.pop %v252
    %v281 = vtanh.pop %v255
    %v282 = vtanh.pop %v260
    %v283 = vtanh.pop %v263
    %v284 = vtanh.pop %v268
    %v285 = vtanh.pop %v271
    %v286 = vld [vmem:[%s3] sm:$0xf]
    %v287 = vld [vmem:[%s3 + $0x4] sm:$0xf]
    %v288 = vld [vmem:[%s3 + $0x8] sm:$0xf]
    %v289 = vld [vmem:[%s3 + $0xc] sm:$0xf]
    %v290 = vld [vmem:[%s3 + $0x10] sm:$0xf]
    %v291 = vld [vmem:[%s3 + $0x14] sm:$0xf]
    %v292 = vld [vmem:[%s3 + $0x18] sm:$0xf]
    %v293 = vld [vmem:[%s3 + $0x1c] sm:$0xf]
    %v294 = vld [vmem:[%s3 + $0x20] sm:$0xf]
    %v295 = vld [vmem:[%s3 + $0x24] sm:$0xf]
    %v296 = vld [vmem:[%s3 + $0x28] sm:$0xf]
    %v297 = vld [vmem:[%s3 + $0x2c] sm:$0xf]
    %v298 = vpack.c.bf16 %v275, %v274
    %v299 = vpack.c.bf16 %v277, %v276
    %v300 = vpack.c.bf16 %v279, %v278
    %v301 = vpack.c.bf16 %v281, %v280
    %v302 = vpack.c.bf16 %v283, %v282
    %v303 = vpack.c.bf16 %v285, %v284
    %v304 = vld [vmem:[%s4] sm:$0xff]
    %v305 = vld [vmem:[%s4 + $0x8] sm:$0xff]
    %v306 = vld [vmem:[%s4 + $0x10] sm:$0xff]
    %v307 = vld [vmem:[%s4 + $0x18] sm:$0xff]
    %v308 = vld [vmem:[%s4 + $0x20] sm:$0xff]
    %v309 = vld [vmem:[%s4 + $0x28] sm:$0xff]
    %v310 = vld [vmem:[%s4 + $0x30] sm:$0xff]
    %v311 = vld [vmem:[%s4 + $0x38] sm:$0xff]
    %v312 = vld [vmem:[%s4 + $0x40] sm:$0xff]
    %v313 = vld [vmem:[%s4 + $0x48] sm:$0xff]
    %v314 = vld [vmem:[%s4 + $0x50] sm:$0xff]
    %v315 = vld [vmem:[%s4 + $0x58] sm:$0xff]
    %317 = vset.pattern.permute.xlu0 0
    %318 = vperm.xlu0 %317, %v304
    %v319 = vpop.permute.xlu0 %318
    %322 = vset.pattern.permute.xlu0 0
    %323 = vperm.xlu0 %322, %v305
    %v324 = vpop.permute.xlu0 %323
    %327 = vset.pattern.permute.xlu0 0
    %328 = vperm.xlu0 %327, %v306
    %v329 = vpop.permute.xlu0 %328
    %332 = vset.pattern.permute.xlu0 0
    %333 = vperm.xlu0 %332, %v307
    %v334 = vpop.permute.xlu0 %333
    %337 = vset.pattern.permute.xlu0 0
    %338 = vperm.xlu0 %337, %v308
    %v339 = vpop.permute.xlu0 %338
    %342 = vset.pattern.permute.xlu0 0
    %343 = vperm.xlu0 %342, %v309
    %v344 = vpop.permute.xlu0 %343
    %347 = vset.pattern.permute.xlu0 0
    %348 = vperm.xlu0 %347, %v310
    %v349 = vpop.permute.xlu0 %348
    %352 = vset.pattern.permute.xlu0 0
    %353 = vperm.xlu0 %352, %v311
    %v354 = vpop.permute.xlu0 %353
    %357 = vset.pattern.permute.xlu0 0
    %358 = vperm.xlu0 %357, %v312
    %v359 = vpop.permute.xlu0 %358
    %362 = vset.pattern.permute.xlu0 0
    %363 = vperm.xlu0 %362, %v313
    %v364 = vpop.permute.xlu0 %363
    %367 = vset.pattern.permute.xlu0 0
    %368 = vperm.xlu0 %367, %v314
    %v369 = vpop.permute.xlu0 %368
    %372 = vset.pattern.permute.xlu0 0
    %373 = vperm.xlu0 %372, %v315
    %v374 = vpop.permute.xlu0 %373
    %v388 = vunpack.c.l.b16 %v286
    %v389 = vunpack.c.l.b16 %v287
    %v390 = vunpack.c.l.b16 %v288
    %v391 = vunpack.c.l.b16 %v289
    %v392 = vunpack.c.l.b16 %v290
    %v393 = vunpack.c.l.b16 %v291
    %v394 = vunpack.c.l.b16 %v292
    %v395 = vunpack.c.l.b16 %v293
    %v396 = vunpack.c.l.b16 %v294
    %v397 = vunpack.c.l.b16 %v295
    %v398 = vunpack.c.l.b16 %v296
    %v399 = vunpack.c.l.b16 %v297
    %v400 = vpack.c.b16 %v389, %v388
    %v401 = vpack.c.b16 %v391, %v390
    %v402 = vpack.c.b16 %v393, %v392
    %v403 = vpack.c.b16 %v395, %v394
    %v404 = vpack.c.b16 %v397, %v396
    %v405 = vpack.c.b16 %v399, %v398
    %vm406 = vcmask 785408
    %v408 = vsel %vm406, %v400, 0
    %v411 = vsel %vm406, %v401, 0
    %v414 = vsel %vm406, %v402, 0
    %v417 = vsel %vm406, %v403, 0
    %v420 = vsel %vm406, %v404, 0
    %v423 = vsel %vm406, %v405, 0
    %425 = vmatprep.subr.bf16.mxu0 0
    %426 = vmatpush1.bf16.msra.mxu0 %v298
    %427 = vmatprep.subr.bf16.mxu0 0
    %428 = vmatpush1.bf16.msra.mxu0 %v299
    %429 = vmatprep.subr.bf16.mxu0 0
    %430 = vmatpush1.bf16.msra.mxu0 %v300
    %431 = vmatprep.subr.bf16.mxu0 0
    %432 = vmatpush1.bf16.msra.mxu0 %v301
    %433 = vmatprep.subr.bf16.mxu0 0
    %434 = vmatpush1.bf16.msra.mxu0 %v302
    %435 = vmatprep.subr.bf16.mxu0 0
    %436 = vmatpush1.bf16.msra.mxu0 %v303
    %437 = vmatprep.subr.bf16.mxu0 0
    %438 = vmatpush1.bf16.msra.mxu0 0
    %439 = vmatprep.subr.bf16.mxu0 0
    %440 = vmatpush1.bf16.msra.mxu0 0
    %441 = vmatprep.subr.bf16.mxu0 0
    %442 = vmatpush1.bf16.msra.mxu0 0
    %443 = vmatprep.subr.bf16.mxu0 0
    %444 = vmatpush1.bf16.msra.mxu0 0
    %445 = vmatprep.subr.bf16.mxu0 0
    %446 = vmatpush1.bf16.msra.mxu0 0
    %447 = vmatprep.subr.bf16.mxu0 0
    %448 = vmatpush1.bf16.msra.mxu0 0
    %449 = vmatprep.subr.bf16.mxu0 0
    %450 = vmatpush1.bf16.msra.mxu0 0
    %451 = vmatprep.subr.bf16.mxu0 0
    %452 = vmatpush1.bf16.msra.mxu0 0
    %453 = vmatprep.subr.bf16.mxu0 0
    %454 = vmatpush1.bf16.msra.mxu0 0
    %455 = vmatprep.subr.bf16.mxu0 0
    %456 = vmatpush1.bf16.msra.mxu0 0
    %457 = vmatprep.mubr.bf16.mxu0 0
    %458 = vmatmul.mubr.bf16.gmra.mrb[0].mxu0 %v408
    %v459 = vpop.f32.mrb[0].mxu0
    %v460 = vadd.f32 %v319, %v459
    %v461 = vpop.f32.mrb[0].mxu0
    %v462 = vpop.f32.mrb[0].mxu0
    %v463 = vadd.f32 %v324, %v462
    %v464 = vpop.f32.mrb[0].mxu0
    %465 = vmatprep.mubr.bf16.mxu0 0
    %466 = vmatmul.mubr.bf16.gmra.mrb[0].mxu0 %v411
    %v467 = vpop.f32.mrb[0].mxu0
    %v468 = vadd.f32 %v329, %v467
    %v469 = vpop.f32.mrb[0].mxu0
    %v470 = vpop.f32.mrb[0].mxu0
    %v471 = vadd.f32 %v334, %v470
    %v472 = vpop.f32.mrb[0].mxu0
    %473 = vmatprep.mubr.bf16.mxu0 0
    %474 = vmatmul.mubr.bf16.gmra.mrb[0].mxu0 %v414
    %v475 = vpop.f32.mrb[0].mxu0
    %v476 = vadd.f32 %v339, %v475
    %v477 = vpop.f32.mrb[0].mxu0
    %v478 = vpop.f32.mrb[0].mxu0
    %v479 = vadd.f32 %v344, %v478
    %v480 = vpop.f32.mrb[0].mxu0
    %481 = vmatprep.mubr.bf16.mxu0 0
    %482 = vmatmul.mubr.bf16.gmra.mrb[0].mxu0 %v417
    %v483 = vpop.f32.mrb[0].mxu0
    %v484 = vadd.f32 %v349, %v483
    %v485 = vpop.f32.mrb[0].mxu0
    %v486 = vpop.f32.mrb[0].mxu0
    %v487 = vadd.f32 %v354, %v486
    %v488 = vpop.f32.mrb[0].mxu0
    %489 = vmatprep.mubr.bf16.mxu0 0
    %490 = vmatmul.mubr.bf16.gmra.mrb[0].mxu0 %v420
    %v491 = vpop.f32.mrb[0].mxu0
    %v492 = vadd.f32 %v359, %v491
    %v493 = vpop.f32.mrb[0].mxu0
    %v494 = vpop.f32.mrb[0].mxu0
    %v495 = vadd.f32 %v364, %v494
    %v496 = vpop.f32.mrb[0].mxu0
    %497 = vmatprep.mubr.bf16.mxu0 0
    %498 = vmatmul.mubr.bf16.gmra.mrb[0].mxu0 %v423
    %v499 = vpop.f32.mrb[0].mxu0
    %v500 = vadd.f32 %v369, %v499
    %v501 = vpop.f32.mrb[0].mxu0
    %v502 = vpop.f32.mrb[0].mxu0
    %v503 = vadd.f32 %v374, %v502
    %v504 = vpop.f32.mrb[0].mxu0
    %505 = vdwg.mxu0
    %v506 = vtanh.pop %v460
    %v507 = vtanh.pop %v463
    %v508 = vtanh.pop %v468
    %v509 = vtanh.pop %v471
    %v510 = vtanh.pop %v476
    %v511 = vtanh.pop %v479
    %v512 = vtanh.pop %v484
    %v513 = vtanh.pop %v487
    %v514 = vtanh.pop %v492
    %v515 = vtanh.pop %v495
    %v516 = vtanh.pop %v500
    %v517 = vtanh.pop %v503
    %v518 = vld [vmem:[%s5] sm:$0x1]
    %v519 = vpack.c.bf16 %v507, %v506
    %v520 = vpack.c.bf16 %v509, %v508
    %v521 = vpack.c.bf16 %v511, %v510
    %v522 = vpack.c.bf16 %v513, %v512
    %v523 = vpack.c.bf16 %v515, %v514
    %v524 = vpack.c.bf16 %v517, %v516
    %v525 = vld [vmem:[#allocation2] sm:$0x1]
    %527 = vset.pattern.permute.xlu0 0
    %528 = vperm.xlu0 %527, %v525
    %v529 = vpop.permute.xlu0 %528
    %v531 = vlaneseq
    %v532 = vshrl.u32 %v531, 7
    %v533 = vsub.s32 0, %v532
    %v534 = vrot.slane %v529, %v533
    %v536 = vsel %vm406, %v518, 0
    %538 = vmatprep.subr.bf16.mxu0 0
    %539 = vmatpush1.bf16.msra.mxu0 %v519
    %540 = vmatprep.subr.bf16.mxu0 0
    %541 = vmatpush1.bf16.msra.mxu0 %v520
    %542 = vmatprep.subr.bf16.mxu0 0
    %543 = vmatpush1.bf16.msra.mxu0 %v521
    %544 = vmatprep.subr.bf16.mxu0 0
    %545 = vmatpush1.bf16.msra.mxu0 %v522
    %546 = vmatprep.subr.bf16.mxu0 0
    %547 = vmatpush1.bf16.msra.mxu0 %v523
    %548 = vmatprep.subr.bf16.mxu0 0
    %549 = vmatpush1.bf16.msra.mxu0 %v524
    %550 = vmatprep.subr.bf16.mxu0 0
    %551 = vmatpush1.bf16.msra.mxu0 0
    %552 = vmatprep.subr.bf16.mxu0 0
    %553 = vmatpush1.bf16.msra.mxu0 0
    %554 = vmatprep.subr.bf16.mxu0 0
    %555 = vmatpush1.bf16.msra.mxu0 0
    %556 = vmatprep.subr.bf16.mxu0 0
    %557 = vmatpush1.bf16.msra.mxu0 0
    %558 = vmatprep.subr.bf16.mxu0 0
    %559 = vmatpush1.bf16.msra.mxu0 0
    %560 = vmatprep.subr.bf16.mxu0 0
    %561 = vmatpush1.bf16.msra.mxu0 0
    %562 = vmatprep.subr.bf16.mxu0 0
    %563 = vmatpush1.bf16.msra.mxu0 0
    %564 = vmatprep.subr.bf16.mxu0 0
    %565 = vmatpush1.bf16.msra.mxu0 0
    %566 = vmatprep.subr.bf16.mxu0 0
    %567 = vmatpush1.bf16.msra.mxu0 0
    %568 = vmatprep.subr.bf16.mxu0 0
    %569 = vmatpush1.bf16.msra.mxu0 0
    %570 = vmatprep.mubr.bf16.mxu0 0
    %571 = vmatmul.mubr.bf16.gmra.mrb[0].mxu0 %v536
    %v572 = vpop.f32.mrb[0].mxu0
    %v573 = vadd.f32 %v534, %v572
    %v574 = vpop.f32.mrb[0].mxu0
    %v575 = vpop.f32.mrb[0].mxu0
    %v576 = vpop.f32.mrb[0].mxu0
    %577 = vdwg.mxu0
    %v578 = vtanh.pop %v573
    %579 = vst [vmem:[#allocation3] sm:$0x1] %v578
    // Predicated region
    $region30: #{ai_evaluation_forward.1} parent=1 // pred_check
      _
    $region31: #{ai_evaluation_forward.1} parent=1 // pred_check_branch
      %581 = sbr.rel (0) target = $region33
    $region32: #{ai_evaluation_forward.1} parent=1 // pred_region
      %s583 = ssub.s32 16, 16
      %584 = vsyncadd [#allocation4], %s583
      %s586 = sshll.u32 [#allocation3], 4
      %s587 = int_to_ptr.vmem [resolvable:$true] %s586
      %589 = dma.vmem_to_hbm [thread:$0]  %s587, 16, %s7, [#allocation4]
    $region33: #{ai_evaluation_forward.1} parent=1 // pred_fallthru
      _
    // Predicated region
    $region34: #{ai_evaluation_forward.1} parent=1 // pred_check
      _
    $region35: #{ai_evaluation_forward.1} parent=1 // pred_check_branch
      %591 = sbr.rel (0) target = $region37
    $region36: #{ai_evaluation_forward.1} parent=1 // pred_region
      %592 = dma.done [#allocation4], 16
    $region37: #{ai_evaluation_forward.1} parent=1 // pred_fallthru
      _
    %593 = vsyncpa [#allocation4], 1

</llo_original>
